<compile_context>
chip_gen: v7x
topology: tpu7x:2x2x1
jax: 0.10.0
libtpu: 0.0.40
codegen_flags: <defaults>
</compile_context>

<pallas_src>
import jax
import jax.numpy as jnp
from jax import lax
from jax.experimental import pallas as pl
from jax.experimental.pallas import tpu as pltpu


def _pre_mlp_kernel(x_ref, w1t_ref, b1_ref, w2t_ref, b2_ref, o_ref):
    """One batch tile of dt -> Linear(5,32) -> ReLU -> Linear(32,2), transposed.

    Shapes (TB = batch tile, on the 128-lane axis):
      x:[K,TB]  w1t:[H,K]  b1:[H,1]  w2t:[O,H]  b2:[O,1]  o:[O,TB]
    """
    h = jnp.dot(w1t_ref[...], x_ref[...],
                preferred_element_type=jnp.float32,
                precision=lax.Precision.HIGHEST)               # [H, TB]
    h = jnp.maximum(h + b1_ref[...], 0.0)
    o = jnp.dot(w2t_ref[...], h,
                preferred_element_type=jnp.float32,
                precision=lax.Precision.HIGHEST) + b2_ref[...]  # [O, TB]
    o_ref[...] = o.astype(o_ref.dtype)


def pre_forward_ref(small_pre, mid_pre, count, params):
    """Pure-JAX (fused XLA) reference; also the small-batch fallback path."""
    w1, b1, w2, b2 = params
    dt = jnp.concatenate([small_pre, mid_pre, count], axis=-1).astype(jnp.float32)
    h = jnp.maximum(jnp.dot(dt, w1, precision=lax.Precision.HIGHEST) + b1, 0.0)
    return jnp.dot(h, w2, precision=lax.Precision.HIGHEST) + b2


def pre_forward(small_pre, mid_pre, count, params, *,
                tb_max=16384, min_pallas_batch=0):
    """Pallas implementation of Pre.forward.  Returns [B, 2] float32."""
    w1, b1, w2, b2 = params            # w1:[5,32] b1:[1,32] w2:[32,2] b2:[1,2]

    small_pre = small_pre.astype(jnp.float32)
    mid_pre = mid_pre.astype(jnp.float32)
    count = count.astype(jnp.float32)

    B = small_pre.shape[0]
    K = small_pre.shape[1] + mid_pre.shape[1] + count.shape[1]
    assert K == w1.shape[0] == 5, (K, w1.shape)
    H = w1.shape[1]                    # 32
    O = w2.shape[1]                    # 2

    if B < min_pallas_batch:
        # Tiny batches: fused XLA beats any pallas_call fixed cost.
        return pre_forward_ref(small_pre, mid_pre, count, params)

    # Feature-major repack (one fused XLA transpose+concat): dt^T is [K, B],
    # so the kernel's activation tiles are lane-dense (batch on the lane axis).
    dt_t = jnp.concatenate([small_pre.T, mid_pre.T, count.T], axis=0)

    # Transposed parameters (tiny one-time XLA ops).
    w1_t = w1.T                        # [H, K]
    b1_t = b1.reshape(1, H).T          # [H, 1]
    w2_t = w2.T                        # [O, H]
    b2_t = b2.reshape(1, O).T          # [O, 1]

    # Batch tile: multiple of 128 (lane axis).  Aim for >= 2 grid steps so both
    # v7x TensorCores get work; shrink to the full extent for very small B
    # (a block equal to the array dim is always legal).  No tail padding:
    # Pallas masks the ragged last block and batch rows never mix.
    assert tb_max % 128 == 0
    TB = max(128, min(tb_max, 128 * pl.cdiv(B, 2 * 128)))
    if B < TB:
        TB = B
    n_steps = pl.cdiv(B, TB)

    out_t = pl.pallas_call(
        _pre_mlp_kernel,
        out_shape=jax.ShapeDtypeStruct((O, B), jnp.float32),
        grid=(n_steps,),
        in_specs=[
            pl.BlockSpec((K, TB), lambda i: (0, i)),     # dt^T tile (lane-dense)
            pl.BlockSpec((H, K), lambda i: (0, 0)),      # W1^T (resident)
            pl.BlockSpec((H, 1), lambda i: (0, 0)),      # b1
            pl.BlockSpec((O, H), lambda i: (0, 0)),      # W2^T
            pl.BlockSpec((O, 1), lambda i: (0, 0)),      # b2
        ],
        out_specs=pl.BlockSpec((O, TB), lambda i: (0, i)),  # lane-dense output
        compiler_params=pltpu.CompilerParams(
            dimension_semantics=("parallel",),           # megacore on v7x
            vmem_limit_bytes=32 << 20,                   # explicit, safe on v5e/v6e/v7x
        ),
    )(dt_t, w1_t, b1_t, w2_t, b2_t)

    # Back to the module's row-major [B, 2] layout.  (If the consumer accepts
    # [2, B], return out_t directly and save an HBM pass.)
    return out_t.T


def init_params(key):
    """Deterministic params matching nn.Linear(5,32) / nn.Linear(32,2) shapes.
    Weights are stored [in, out] for row-vector matmul in the reference."""
    k1, k2, k3, k4 = jax.random.split(key, 4)
    bound1 = 1.0 / jnp.sqrt(5.0)
    bound2 = 1.0 / jnp.sqrt(32.0)
    w1 = jax.random.uniform(k1, (5, 32), jnp.float32, -bound1, bound1)
    b1 = jax.random.uniform(k2, (1, 32), jnp.float32, -bound1, bound1)
    w2 = jax.random.uniform(k3, (32, 2), jnp.float32, -bound2, bound2)
    b2 = jax.random.uniform(k4, (1, 2), jnp.float32, -bound2, bound2)
    return (w1, b1, w2, b2)


if __name__ == "__main__":
    key = jax.random.PRNGKey(0)
    kp, _ = jax.random.split(key)
    params = init_params(kp)

    def check(B, tb_max):
        k1, k2, k3 = jax.random.split(jax.random.fold_in(key, B), 3)
        small = jax.random.normal(k1, (B, 2), jnp.float32)
        mid = jax.random.normal(k2, (B, 2), jnp.float32)
        cnt = jax.random.normal(k3, (B, 1), jnp.float32)
        out = jax.block_until_ready(
            pre_forward(small, mid, cnt, params, tb_max=tb_max))
        ref = pre_forward_ref(small, mid, cnt, params)
        assert out.shape == (B, 2), out.shape
        assert jnp.allclose(out, ref, atol=1e-3, rtol=1e-3), \
            f"mismatch vs reference at B={B}"

    # Small shapes covering: single full-extent block, exact multi-step grid,
    # and a multi-step grid with a ragged (unpadded) last block.
    check(B=8, tb_max=16384)
    check(B=512, tb_max=128)
    check(B=300, tb_max=128)

    print("KERNEL_OK")
</pallas_src>

<mosaic_0001>
module attributes {stable_mosaic.version = 11 : i64} {
  func.func @_pre_mlp_kernel(%arg0: i32, %arg1: memref<5x8xf32, #tpu.memory_space<vmem>>, %arg2: memref<32x5xf32, #tpu.memory_space<vmem>>, %arg3: memref<32x1xf32, #tpu.memory_space<vmem>>, %arg4: memref<2x32xf32, #tpu.memory_space<vmem>>, %arg5: memref<2x1xf32, #tpu.memory_space<vmem>>, %arg6: memref<2x8xf32, #tpu.memory_space<vmem>>) attributes {dimension_semantics = [#tpu.dimension_semantics<parallel>], iteration_bounds = array<i64: 1>, scalar_prefetch = 0 : i64, scratch_operands = 0 : i64, tpu.core_type = #tpu.core_type<tc>, window_params = [{transform_indices = @transform_0, window_bounds = array<i64: 5, 8>}, {pipeline_mode = #tpu.pipeline_mode<synchronous>, transform_indices = @transform_1, window_bounds = array<i64: 32, 5>}, {pipeline_mode = #tpu.pipeline_mode<synchronous>, transform_indices = @transform_2, window_bounds = array<i64: 32, 1>}, {pipeline_mode = #tpu.pipeline_mode<synchronous>, transform_indices = @transform_3, window_bounds = array<i64: 2, 32>}, {pipeline_mode = #tpu.pipeline_mode<synchronous>, transform_indices = @transform_4, window_bounds = array<i64: 2, 1>}, {transform_indices = @transform_5, window_bounds = array<i64: 2, 8>}]} {
    %c0 = arith.constant 0 : index
    %c0_0 = arith.constant 0 : index
    %0 = vector.load %arg2[%c0, %c0_0] : memref<32x5xf32, #tpu.memory_space<vmem>>, vector<32x5xf32>
    %c0_1 = arith.constant 0 : index
    %c0_2 = arith.constant 0 : index
    %1 = vector.load %arg1[%c0_1, %c0_2] : memref<5x8xf32, #tpu.memory_space<vmem>>, vector<5x8xf32>
    %cst = arith.constant dense<0.000000e+00> : vector<32x8xf32>
    %2 = tpu.matmul %0, %1, %cst {dimension_numbers = #tpu.dot_dimension_numbers<[1], [0], [0], [1], [0, 0, 1, 1], [], []>, precision = #tpu.contract_precision<fp32>} : vector<32x5xf32>, vector<5x8xf32>, vector<32x8xf32> -> vector<32x8xf32>
    %c0_3 = arith.constant 0 : index
    %c0_4 = arith.constant 0 : index
    %3 = vector.load %arg3[%c0_3, %c0_4] : memref<32x1xf32, #tpu.memory_space<vmem>>, vector<32x1xf32>
    %4 = vector.broadcast %3 : vector<32x1xf32> to vector<32x8xf32>
    %5 = arith.addf %2, %4 : vector<32x8xf32>
    %cst_5 = arith.constant 0.000000e+00 : f32
    %6 = vector.broadcast %cst_5 : f32 to vector<32x8xf32>
    %7 = arith.maximumf %5, %6 : vector<32x8xf32>
    %c0_6 = arith.constant 0 : index
    %c0_7 = arith.constant 0 : index
    %8 = vector.load %arg4[%c0_6, %c0_7] : memref<2x32xf32, #tpu.memory_space<vmem>>, vector<2x32xf32>
    %cst_8 = arith.constant dense<0.000000e+00> : vector<2x8xf32>
    %9 = tpu.matmul %8, %7, %cst_8 {dimension_numbers = #tpu.dot_dimension_numbers<[1], [0], [0], [1], [0, 0, 1, 1], [], []>, precision = #tpu.contract_precision<fp32>} : vector<2x32xf32>, vector<32x8xf32>, vector<2x8xf32> -> vector<2x8xf32>
    %c0_9 = arith.constant 0 : index
    %c0_10 = arith.constant 0 : index
    %10 = vector.load %arg5[%c0_9, %c0_10] : memref<2x1xf32, #tpu.memory_space<vmem>>, vector<2x1xf32>
    %11 = vector.broadcast %10 : vector<2x1xf32> to vector<2x8xf32>
    %12 = arith.addf %9, %11 : vector<2x8xf32>
    %c0_11 = arith.constant 0 : index
    %c0_12 = arith.constant 0 : index
    %13 = vector.load %arg6[%c0_11, %c0_12] : memref<2x8xf32, #tpu.memory_space<vmem>>, vector<2x8xf32>
    tpu.vector_store %arg6[%c0_11, %c0_12], %12 {strides = array<i32>} : memref<2x8xf32, #tpu.memory_space<vmem>>, vector<2x8xf32>,
    return
  }
  func.func @transform_0(%arg0: i32) -> (i32, i32) {
    %c0_i32 = arith.constant 0 : i32
    %c0_i32_0 = arith.constant 0 : i32
    return %c0_i32, %arg0 : i32, i32
  }
  func.func @transform_1(%arg0: i32) -> (i32, i32) {
    %c0_i32 = arith.constant 0 : i32
    %c0_i32_0 = arith.constant 0 : i32
    %c0_i32_1 = arith.constant 0 : i32
    return %c0_i32, %c0_i32_0 : i32, i32
  }
  func.func @transform_2(%arg0: i32) -> (i32, i32) {
    %c0_i32 = arith.constant 0 : i32
    %c0_i32_0 = arith.constant 0 : i32
    %c0_i32_1 = arith.constant 0 : i32
    return %c0_i32, %c0_i32_0 : i32, i32
  }
  func.func @transform_3(%arg0: i32) -> (i32, i32) {
    %c0_i32 = arith.constant 0 : i32
    %c0_i32_0 = arith.constant 0 : i32
    %c0_i32_1 = arith.constant 0 : i32
    return %c0_i32, %c0_i32_0 : i32, i32
  }
  func.func @transform_4(%arg0: i32) -> (i32, i32) {
    %c0_i32 = arith.constant 0 : i32
    %c0_i32_0 = arith.constant 0 : i32
    %c0_i32_1 = arith.constant 0 : i32
    return %c0_i32, %c0_i32_0 : i32, i32
  }
  func.func @transform_5(%arg0: i32) -> (i32, i32) {
    %c0_i32 = arith.constant 0 : i32
    %c0_i32_0 = arith.constant 0 : i32
    return %c0_i32, %arg0 : i32, i32
  }
}

</mosaic_0001>

<llo_original>
// kernel: tpu_custom_call.1
$region0: #{tpu_custom_call.1}
  #allocation0 [shape = 'u32[]', space=smem, size = 0x4, offset = 0x4, fixed_abs, tag = 'smem constant byte address 0x4 - core index']
  #allocation1 [shape = 'u32[144,128]{1,0:T(1,128)}', space=vmem, size = 0x12000, scoped, tag = 'internal scratch']
  %s0 = inlined_call_operand.vmem [shape: f32[5,8], index: 0, kind: input, shape index: {}]
  %s1 = inlined_call_operand.vmem [shape: f32[32,5], index: 1, kind: input, shape index: {}]
  %s2 = inlined_call_operand.vmem [shape: f32[32,1], index: 2, kind: input, shape index: {}]
  %s3 = inlined_call_operand.vmem [shape: f32[2,32], index: 3, kind: input, shape index: {}]
  %s4 = inlined_call_operand.vmem [shape: f32[2,1], index: 4, kind: input, shape index: {}]
  %s5 = inlined_call_operand.hbm [shape: f32[2,8], index: 5, kind: output, shape index: {}]
  %s6 = sld [smem:[#allocation0]]
  $region30: #{tpu_custom_call.1} parent=0
    _
  %s8 = ssub.s32 1, %s6
  %s9 = scalar_select 0, %s8, %s6
  $region1: #{tpu_custom_call.1} parent=0
    #allocation2 [shape = 'u8[1024]{0}', space=vmem, size = 0x400, scoped, tag = 'output window, operand 0, single buffered']
    #allocation3 [shape = 's32[1]{0}', space=sflag, size = 0x4, scoped, tag = 'scoped memory for tpu_custom_call.1']
    %10 = vsyncpa [#allocation3], 0
    // Predicated region
    $region2: #{tpu_custom_call.1} parent=1 // pred_check
      _
    $region3: #{tpu_custom_call.1} parent=1 // pred_check_branch
      %12 = sbr.rel (0) target = $region5
    $region4: #{tpu_custom_call.1} parent=1 // pred_region
      _
    $region5: #{tpu_custom_call.1} parent=1 // pred_fallthru
      _
    // Predicated region
    $region6: #{tpu_custom_call.1} parent=1 // pred_check
      _
    $region7: #{tpu_custom_call.1} parent=1 // pred_check_branch
      %14 = sbr.rel (0) target = $region9
    $region8: #{tpu_custom_call.1} parent=1 // pred_region
      _
    $region9: #{tpu_custom_call.1} parent=1 // pred_fallthru
      _
    // Predicated region
    $region10: #{tpu_custom_call.1} parent=1 // pred_check
      _
    $region11: #{tpu_custom_call.1} parent=1 // pred_check_branch
      %16 = sbr.rel (0) target = $region13
    $region12: #{tpu_custom_call.1} parent=1 // pred_region
      _
    $region13: #{tpu_custom_call.1} parent=1 // pred_fallthru
      _
    // Predicated region
    $region14: #{tpu_custom_call.1} parent=1 // pred_check
      _
    $region15: #{tpu_custom_call.1} parent=1 // pred_check_branch
      %18 = sbr.rel (0) target = $region17
    $region16: #{tpu_custom_call.1} parent=1 // pred_region
      _
    $region17: #{tpu_custom_call.1} parent=1 // pred_fallthru
      _
    // Predicated region
    $region18: #{tpu_custom_call.1} parent=1 // pred_check
      _
    $region19: #{tpu_custom_call.1} parent=1 // pred_check_branch
      %20 = sbr.rel (0) target = $region21
    $region20: #{tpu_custom_call.1} parent=1 // pred_region
      _
    $region21: #{tpu_custom_call.1} parent=1 // pred_fallthru
      _
    %v21 = vld [vmem:[%s1] sm:$0xff]
    %v22 = vld [vmem:[%s1 + $0x8] sm:$0xff]
    %v23 = vld [vmem:[%s1 + $0x10] sm:$0xff]
    %v24 = vld [vmem:[%s1 + $0x18] sm:$0xff]
    %v25 = vld [vmem:[%s0] sm:$0x1f]
    %v26 = vld [vmem:[%s2] sm:$0xff]
    %v27 = vld [vmem:[%s2 + $0x8] sm:$0xff]
    %v28 = vld [vmem:[%s2 + $0x10] sm:$0xff]
    %v29 = vld [vmem:[%s2 + $0x18] sm:$0xff]
    %31 = vset.pattern.permute.xlu0 0
    %32 = vperm.xlu0 %31, %v26
    %v33 = vpop.permute.xlu0 %32
    %36 = vset.pattern.permute.xlu0 0
    %37 = vperm.xlu0 %36, %v27
    %v38 = vpop.permute.xlu0 %37
    %41 = vset.pattern.permute.xlu0 0
    %42 = vperm.xlu0 %41, %v28
    %v43 = vpop.permute.xlu0 %42
    %46 = vset.pattern.permute.xlu0 0
    %47 = vperm.xlu0 %46, %v29
    %v48 = vpop.permute.xlu0 %47
    %vm50 = vcmask 39936
    %v52 = vsel %vm50, %v21, 0
    %v55 = vsel %vm50, %v22, 0
    %v58 = vsel %vm50, %v23, 0
    %v61 = vsel %vm50, %v24, 0
    %vm63 = vcmask 1044480
    %v65 = vsel %vm63, %v25, 0
    %67 = vmatprep.subr.mxu0 0.0
    %v68 = vand.u32 %v65, 4294901760
    %69 = vmatpush1.msra.mxu0 %v68
    %70 = vmatprep.subr.mxu0 0.0
    %71 = vmatpush1.msra.mxu0 0.0
    %72 = vmatprep.subr.mxu0 0.0
    %73 = vmatpush1.msra.mxu0 0.0
    %74 = vmatprep.subr.mxu0 0.0
    %75 = vmatpush1.msra.mxu0 0.0
    %76 = vmatprep.subr.mxu0 0.0
    %77 = vmatpush1.msra.mxu0 0.0
    %78 = vmatprep.subr.mxu0 0.0
    %79 = vmatpush1.msra.mxu0 0.0
    %80 = vmatprep.subr.mxu0 0.0
    %81 = vmatpush1.msra.mxu0 0.0
    %82 = vmatprep.subr.mxu0 0.0
    %83 = vmatpush1.msra.mxu0 0.0
    %84 = vmatprep.subr.mxu0 0.0
    %85 = vmatpush1.msra.mxu0 0.0
    %86 = vmatprep.subr.mxu0 0.0
    %87 = vmatpush1.msra.mxu0 0.0
    %88 = vmatprep.subr.mxu0 0.0
    %89 = vmatpush1.msra.mxu0 0.0
    %90 = vmatprep.subr.mxu0 0.0
    %91 = vmatpush1.msra.mxu0 0.0
    %92 = vmatprep.subr.mxu0 0.0
    %93 = vmatpush1.msra.mxu0 0.0
    %94 = vmatprep.subr.mxu0 0.0
    %95 = vmatpush1.msra.mxu0 0.0
    %96 = vmatprep.subr.mxu0 0.0
    %97 = vmatpush1.msra.mxu0 0.0
    %98 = vmatprep.subr.mxu0 0.0
    %99 = vmatpush1.msra.mxu0 0.0
    %100 = vmatprep.subr.mxu0 0.0
    %101 = vmatpush1.msra.mxu0 0.0
    %102 = vmatprep.subr.mxu0 0.0
    %103 = vmatpush1.msra.mxu0 0.0
    %104 = vmatprep.subr.mxu0 0.0
    %105 = vmatpush1.msra.mxu0 0.0
    %106 = vmatprep.subr.mxu0 0.0
    %107 = vmatpush1.msra.mxu0 0.0
    %108 = vmatprep.subr.mxu0 0.0
    %109 = vmatpush1.msra.mxu0 0.0
    %110 = vmatprep.subr.mxu0 0.0
    %111 = vmatpush1.msra.mxu0 0.0
    %112 = vmatprep.subr.mxu0 0.0
    %113 = vmatpush1.msra.mxu0 0.0
    %114 = vmatprep.subr.mxu0 0.0
    %115 = vmatpush1.msra.mxu0 0.0
    %116 = vmatprep.subr.mxu0 0.0
    %117 = vmatpush1.msra.mxu0 0.0
    %118 = vmatprep.subr.mxu0 0.0
    %119 = vmatpush1.msra.mxu0 0.0
    %120 = vmatprep.subr.mxu0 0.0
    %121 = vmatpush1.msra.mxu0 0.0
    %122 = vmatprep.subr.mxu0 0.0
    %123 = vmatpush1.msra.mxu0 0.0
    %124 = vmatprep.subr.mxu0 0.0
    %125 = vmatpush1.msra.mxu0 0.0
    %126 = vmatprep.subr.mxu0 0.0
    %127 = vmatpush1.msra.mxu0 0.0
    %128 = vmatprep.subr.mxu0 0.0
    %129 = vmatpush1.msra.mxu0 0.0
    %130 = vmatprep.subr.mxu0 0.0
    %131 = vmatpush1.msra.mxu0 0.0
    %132 = vmatprep.mubr.f32.mxu0 0.0
    %v133 = vand.u32 %v52, 4294901760
    %v134 = vsub.f32 %v52, %v133
    %v135 = vand.u32 %v134, 4294901760
    %v136 = vsub.f32 %v134, %v135
    %v137 = vand.u32 %v136, 4294901760
    %138 = vmatmul.mubr.f32.gmra.mrb[0].mxu0 %v137
    %v139 = vpop.f32.mrb[0].mxu0
    %v140 = vadd.f32 %v33, %v139
    %v141 = vpop.f32.mrb[0].mxu0
    %142 = vmatprep.mubr.f32.mxu0 0.0
    %v143 = vand.u32 %v55, 4294901760
    %v144 = vsub.f32 %v55, %v143
    %v145 = vand.u32 %v144, 4294901760
    %v146 = vsub.f32 %v144, %v145
    %v147 = vand.u32 %v146, 4294901760
    %148 = vmatmul.mubr.f32.gmra.mrb[0].mxu0 %v147
    %v149 = vpop.f32.mrb[0].mxu0
    %v150 = vadd.f32 %v38, %v149
    %v151 = vpop.f32.mrb[0].mxu0
    %152 = vmatprep.mubr.f32.mxu0 0.0
    %v153 = vand.u32 %v58, 4294901760
    %v154 = vsub.f32 %v58, %v153
    %v155 = vand.u32 %v154, 4294901760
    %v156 = vsub.f32 %v154, %v155
    %v157 = vand.u32 %v156, 4294901760
    %158 = vmatmul.mubr.f32.gmra.mrb[0].mxu0 %v157
    %v159 = vpop.f32.mrb[0].mxu0
    %v160 = vadd.f32 %v43, %v159
    %v161 = vpop.f32.mrb[0].mxu0
    %162 = vmatprep.mubr.f32.mxu0 0.0
    %v163 = vand.u32 %v61, 4294901760
    %v164 = vsub.f32 %v61, %v163
    %v165 = vand.u32 %v164, 4294901760
    %v166 = vsub.f32 %v164, %v165
    %v167 = vand.u32 %v166, 4294901760
    %168 = vmatmul.mubr.f32.gmra.mrb[0].mxu0 %v167
    %v169 = vpop.f32.mrb[0].mxu0
    %v170 = vadd.f32 %v48, %v169
    %v171 = vpop.f32.mrb[0].mxu0
    %172 = vdwg.mxu0
    %173 = vmatprep.subr.mxu0 0.0
    %v174 = vand.u32 %v65, 4294901760
    %v175 = vsub.f32 %v65, %v174
    %v176 = vand.u32 %v175, 4294901760
    %v177 = vsub.f32 %v175, %v176
    %v178 = vand.u32 %v177, 4294901760
    %179 = vmatpush1.msra.mxu0 %v178
    %180 = vmatprep.subr.mxu0 0.0
    %181 = vmatpush1.msra.mxu0 0.0
    %182 = vmatprep.subr.mxu0 0.0
    %183 = vmatpush1.msra.mxu0 0.0
    %184 = vmatprep.subr.mxu0 0.0
    %185 = vmatpush1.msra.mxu0 0.0
    %186 = vmatprep.subr.mxu0 0.0
    %187 = vmatpush1.msra.mxu0 0.0
    %188 = vmatprep.subr.mxu0 0.0
    %189 = vmatpush1.msra.mxu0 0.0
    %190 = vmatprep.subr.mxu0 0.0
    %191 = vmatpush1.msra.mxu0 0.0
    %192 = vmatprep.subr.mxu0 0.0
    %193 = vmatpush1.msra.mxu0 0.0
    %194 = vmatprep.subr.mxu0 0.0
    %195 = vmatpush1.msra.mxu0 0.0
    %196 = vmatprep.subr.mxu0 0.0
    %197 = vmatpush1.msra.mxu0 0.0
    %198 = vmatprep.subr.mxu0 0.0
    %199 = vmatpush1.msra.mxu0 0.0
    %200 = vmatprep.subr.mxu0 0.0
    %201 = vmatpush1.msra.mxu0 0.0
    %202 = vmatprep.subr.mxu0 0.0
    %203 = vmatpush1.msra.mxu0 0.0
    %204 = vmatprep.subr.mxu0 0.0
    %205 = vmatpush1.msra.mxu0 0.0
    %206 = vmatprep.subr.mxu0 0.0
    %207 = vmatpush1.msra.mxu0 0.0
    %208 = vmatprep.subr.mxu0 0.0
    %209 = vmatpush1.msra.mxu0 0.0
    %210 = vmatprep.subr.mxu0 0.0
    %211 = vmatpush1.msra.mxu0 0.0
    %212 = vmatprep.subr.mxu0 0.0
    %213 = vmatpush1.msra.mxu0 0.0
    %214 = vmatprep.subr.mxu0 0.0
    %215 = vmatpush1.msra.mxu0 0.0
    %216 = vmatprep.subr.mxu0 0.0
    %217 = vmatpush1.msra.mxu0 0.0
    %218 = vmatprep.subr.mxu0 0.0
    %219 = vmatpush1.msra.mxu0 0.0
    %220 = vmatprep.subr.mxu0 0.0
    %221 = vmatpush1.msra.mxu0 0.0
    %222 = vmatprep.subr.mxu0 0.0
    %223 = vmatpush1.msra.mxu0 0.0
    %224 = vmatprep.subr.mxu0 0.0
    %225 = vmatpush1.msra.mxu0 0.0
    %226 = vmatprep.subr.mxu0 0.0
    %227 = vmatpush1.msra.mxu0 0.0
    %228 = vmatprep.subr.mxu0 0.0
    %229 = vmatpush1.msra.mxu0 0.0
    %230 = vmatprep.subr.mxu0 0.0
    %231 = vmatpush1.msra.mxu0 0.0
    %232 = vmatprep.subr.mxu0 0.0
    %233 = vmatpush1.msra.mxu0 0.0
    %234 = vmatprep.subr.mxu0 0.0
    %235 = vmatpush1.msra.mxu0 0.0
    %236 = vmatprep.subr.mxu0 0.0
    %237 = vmatpush1.msra.mxu0 0.0
    %238 = vmatprep.subr.mxu0 0.0
    %239 = vmatpush1.msra.mxu0 0.0
    %240 = vmatprep.subr.mxu0 0.0
    %241 = vmatpush1.msra.mxu0 0.0
    %242 = vmatprep.mubr.f32.mxu0 0.0
    %v243 = vand.u32 %v52, 4294901760
    %244 = vmatmul.mubr.f32.gmra.mrb[0].mxu0 %v243
    %v245 = vpop.f32.mrb[0].mxu0
    %v246 = vadd.f32 %v140, %v245
    %v247 = vpop.f32.mrb[0].mxu0
    %248 = vmatprep.mubr.f32.mxu0 0.0
    %v249 = vand.u32 %v55, 4294901760
    %250 = vmatmul.mubr.f32.gmra.mrb[0].mxu0 %v249
    %v251 = vpop.f32.mrb[0].mxu0
    %v252 = vadd.f32 %v150, %v251
    %v253 = vpop.f32.mrb[0].mxu0
    %254 = vmatprep.mubr.f32.mxu0 0.0
    %v255 = vand.u32 %v58, 4294901760
    %256 = vmatmul.mubr.f32.gmra.mrb[0].mxu0 %v255
    %v257 = vpop.f32.mrb[0].mxu0
    %v258 = vadd.f32 %v160, %v257
    %v259 = vpop.f32.mrb[0].mxu0
    %260 = vmatprep.mubr.f32.mxu0 0.0
    %v261 = vand.u32 %v61, 4294901760
    %262 = vmatmul.mubr.f32.gmra.mrb[0].mxu0 %v261
    %v263 = vpop.f32.mrb[0].mxu0
    %v264 = vadd.f32 %v170, %v263
    %v265 = vpop.f32.mrb[0].mxu0
    %266 = vdwg.mxu0
    %267 = vmatprep.subr.mxu0 0.0
    %v268 = vand.u32 %v65, 4294901760
    %v269 = vsub.f32 %v65, %v268
    %270 = vmatpush1.msra.mxu0 %v269
    %271 = vmatprep.subr.mxu0 0.0
    %272 = vmatpush1.msra.mxu0 0.0
    %273 = vmatprep.subr.mxu0 0.0
    %274 = vmatpush1.msra.mxu0 0.0
    %275 = vmatprep.subr.mxu0 0.0
    %276 = vmatpush1.msra.mxu0 0.0
    %277 = vmatprep.subr.mxu0 0.0
    %278 = vmatpush1.msra.mxu0 0.0
    %279 = vmatprep.subr.mxu0 0.0
    %280 = vmatpush1.msra.mxu0 0.0
    %281 = vmatprep.subr.mxu0 0.0
    %282 = vmatpush1.msra.mxu0 0.0
    %283 = vmatprep.subr.mxu0 0.0
    %284 = vmatpush1.msra.mxu0 0.0
    %285 = vmatprep.subr.mxu0 0.0
    %286 = vmatpush1.msra.mxu0 0.0
    %287 = vmatprep.subr.mxu0 0.0
    %288 = vmatpush1.msra.mxu0 0.0
    %289 = vmatprep.subr.mxu0 0.0
    %290 = vmatpush1.msra.mxu0 0.0
    %291 = vmatprep.subr.mxu0 0.0
    %292 = vmatpush1.msra.mxu0 0.0
    %293 = vmatprep.subr.mxu0 0.0
    %294 = vmatpush1.msra.mxu0 0.0
    %295 = vmatprep.subr.mxu0 0.0
    %296 = vmatpush1.msra.mxu0 0.0
    %297 = vmatprep.subr.mxu0 0.0
    %298 = vmatpush1.msra.mxu0 0.0
    %299 = vmatprep.subr.mxu0 0.0
    %300 = vmatpush1.msra.mxu0 0.0
    %301 = vmatprep.subr.mxu0 0.0
    %302 = vmatpush1.msra.mxu0 0.0
    %303 = vmatprep.subr.mxu0 0.0
    %304 = vmatpush1.msra.mxu0 0.0
    %305 = vmatprep.subr.mxu0 0.0
    %306 = vmatpush1.msra.mxu0 0.0
    %307 = vmatprep.subr.mxu0 0.0
    %308 = vmatpush1.msra.mxu0 0.0
    %309 = vmatprep.subr.mxu0 0.0
    %310 = vmatpush1.msra.mxu0 0.0
    %311 = vmatprep.subr.mxu0 0.0
    %312 = vmatpush1.msra.mxu0 0.0
    %313 = vmatprep.subr.mxu0 0.0
    %314 = vmatpush1.msra.mxu0 0.0
    %315 = vmatprep.subr.mxu0 0.0
    %316 = vmatpush1.msra.mxu0 0.0
    %317 = vmatprep.subr.mxu0 0.0
    %318 = vmatpush1.msra.mxu0 0.0
    %319 = vmatprep.subr.mxu0 0.0
    %320 = vmatpush1.msra.mxu0 0.0
    %321 = vmatprep.subr.mxu0 0.0
    %322 = vmatpush1.msra.mxu0 0.0
    %323 = vmatprep.subr.mxu0 0.0
    %324 = vmatpush1.msra.mxu0 0.0
    %325 = vmatprep.subr.mxu0 0.0
    %326 = vmatpush1.msra.mxu0 0.0
    %327 = vmatprep.subr.mxu0 0.0
    %328 = vmatpush1.msra.mxu0 0.0
    %329 = vmatprep.subr.mxu0 0.0
    %330 = vmatpush1.msra.mxu0 0.0
    %331 = vmatprep.subr.mxu0 0.0
    %332 = vmatpush1.msra.mxu0 0.0
    %333 = vmatprep.mubr.f32.mxu0 0.0
    %v334 = vand.u32 %v52, 4294901760
    %v335 = vsub.f32 %v52, %v334
    %336 = vmatmul.mubr.f32.gmra.mrb[0].mxu0 %v335
    %v337 = vpop.f32.mrb[0].mxu0
    %v338 = vadd.f32 %v246, %v337
    %v339 = vpop.f32.mrb[0].mxu0
    %340 = vmatprep.mubr.f32.mxu0 0.0
    %v341 = vand.u32 %v55, 4294901760
    %v342 = vsub.f32 %v55, %v341
    %343 = vmatmul.mubr.f32.gmra.mrb[0].mxu0 %v342
    %v344 = vpop.f32.mrb[0].mxu0
    %v345 = vadd.f32 %v252, %v344
    %v346 = vpop.f32.mrb[0].mxu0
    %347 = vmatprep.mubr.f32.mxu0 0.0
    %v348 = vand.u32 %v58, 4294901760
    %v349 = vsub.f32 %v58, %v348
    %350 = vmatmul.mubr.f32.gmra.mrb[0].mxu0 %v349
    %v351 = vpop.f32.mrb[0].mxu0
    %v352 = vadd.f32 %v258, %v351
    %v353 = vpop.f32.mrb[0].mxu0
    %354 = vmatprep.mubr.f32.mxu0 0.0
    %v355 = vand.u32 %v61, 4294901760
    %v356 = vsub.f32 %v61, %v355
    %357 = vmatmul.mubr.f32.gmra.mrb[0].mxu0 %v356
    %v358 = vpop.f32.mrb[0].mxu0
    %v359 = vadd.f32 %v264, %v358
    %v360 = vpop.f32.mrb[0].mxu0
    %361 = vdwg.mxu0
    %362 = vmatprep.subr.mxu0 0.0
    %v363 = vand.u32 %v65, 4294901760
    %364 = vmatpush1.msra.mxu0 %v363
    %365 = vmatprep.subr.mxu0 0.0
    %366 = vmatpush1.msra.mxu0 0.0
    %367 = vmatprep.subr.mxu0 0.0
    %368 = vmatpush1.msra.mxu0 0.0
    %369 = vmatprep.subr.mxu0 0.0
    %370 = vmatpush1.msra.mxu0 0.0
    %371 = vmatprep.subr.mxu0 0.0
    %372 = vmatpush1.msra.mxu0 0.0
    %373 = vmatprep.subr.mxu0 0.0
    %374 = vmatpush1.msra.mxu0 0.0
    %375 = vmatprep.subr.mxu0 0.0
    %376 = vmatpush1.msra.mxu0 0.0
    %377 = vmatprep.subr.mxu0 0.0
    %378 = vmatpush1.msra.mxu0 0.0
    %379 = vmatprep.subr.mxu0 0.0
    %380 = vmatpush1.msra.mxu0 0.0
    %381 = vmatprep.subr.mxu0 0.0
    %382 = vmatpush1.msra.mxu0 0.0
    %383 = vmatprep.subr.mxu0 0.0
    %384 = vmatpush1.msra.mxu0 0.0
    %385 = vmatprep.subr.mxu0 0.0
    %386 = vmatpush1.msra.mxu0 0.0
    %387 = vmatprep.subr.mxu0 0.0
    %388 = vmatpush1.msra.mxu0 0.0
    %389 = vmatprep.subr.mxu0 0.0
    %390 = vmatpush1.msra.mxu0 0.0
    %391 = vmatprep.subr.mxu0 0.0
    %392 = vmatpush1.msra.mxu0 0.0
    %393 = vmatprep.subr.mxu0 0.0
    %394 = vmatpush1.msra.mxu0 0.0
    %395 = vmatprep.subr.mxu0 0.0
    %396 = vmatpush1.msra.mxu0 0.0
    %397 = vmatprep.subr.mxu0 0.0
    %398 = vmatpush1.msra.mxu0 0.0
    %399 = vmatprep.subr.mxu0 0.0
    %400 = vmatpush1.msra.mxu0 0.0
    %401 = vmatprep.subr.mxu0 0.0
    %402 = vmatpush1.msra.mxu0 0.0
    %403 = vmatprep.subr.mxu0 0.0
    %404 = vmatpush1.msra.mxu0 0.0
    %405 = vmatprep.subr.mxu0 0.0
    %406 = vmatpush1.msra.mxu0 0.0
    %407 = vmatprep.subr.mxu0 0.0
    %408 = vmatpush1.msra.mxu0 0.0
    %409 = vmatprep.subr.mxu0 0.0
    %410 = vmatpush1.msra.mxu0 0.0
    %411 = vmatprep.subr.mxu0 0.0
    %412 = vmatpush1.msra.mxu0 0.0
    %413 = vmatprep.subr.mxu0 0.0
    %414 = vmatpush1.msra.mxu0 0.0
    %415 = vmatprep.subr.mxu0 0.0
    %416 = vmatpush1.msra.mxu0 0.0
    %417 = vmatprep.subr.mxu0 0.0
    %418 = vmatpush1.msra.mxu0 0.0
    %419 = vmatprep.subr.mxu0 0.0
    %420 = vmatpush1.msra.mxu0 0.0
    %421 = vmatprep.subr.mxu0 0.0
    %422 = vmatpush1.msra.mxu0 0.0
    %423 = vmatprep.subr.mxu0 0.0
    %424 = vmatpush1.msra.mxu0 0.0
    %425 = vmatprep.subr.mxu0 0.0
    %426 = vmatpush1.msra.mxu0 0.0
    %427 = vmatprep.mubr.f32.mxu0 0.0
    %v428 = vand.u32 %v52, 4294901760
    %v429 = vsub.f32 %v52, %v428
    %v430 = vand.u32 %v429, 4294901760
    %431 = vmatmul.mubr.f32.gmra.mrb[0].mxu0 %v430
    %v432 = vpop.f32.mrb[0].mxu0
    %v433 = vadd.f32 %v338, %v432
    %v434 = vpop.f32.mrb[0].mxu0
    %435 = vmatprep.mubr.f32.mxu0 0.0
    %v436 = vand.u32 %v55, 4294901760
    %v437 = vsub.f32 %v55, %v436
    %v438 = vand.u32 %v437, 4294901760
    %439 = vmatmul.mubr.f32.gmra.mrb[0].mxu0 %v438
    %v440 = vpop.f32.mrb[0].mxu0
    %v441 = vadd.f32 %v345, %v440
    %v442 = vpop.f32.mrb[0].mxu0
    %443 = vmatprep.mubr.f32.mxu0 0.0
    %v444 = vand.u32 %v58, 4294901760
    %v445 = vsub.f32 %v58, %v444
    %v446 = vand.u32 %v445, 4294901760
    %447 = vmatmul.mubr.f32.gmra.mrb[0].mxu0 %v446
    %v448 = vpop.f32.mrb[0].mxu0
    %v449 = vadd.f32 %v352, %v448
    %v450 = vpop.f32.mrb[0].mxu0
    %451 = vmatprep.mubr.f32.mxu0 0.0
    %v452 = vand.u32 %v61, 4294901760
    %v453 = vsub.f32 %v61, %v452
    %v454 = vand.u32 %v453, 4294901760
    %455 = vmatmul.mubr.f32.gmra.mrb[0].mxu0 %v454
    %v456 = vpop.f32.mrb[0].mxu0
    %v457 = vadd.f32 %v359, %v456
    %v458 = vpop.f32.mrb[0].mxu0
    %459 = vdwg.mxu0
    %460 = vmatprep.subr.mxu0 0.0
    %v461 = vand.u32 %v65, 4294901760
    %v462 = vsub.f32 %v65, %v461
    %v463 = vand.u32 %v462, 4294901760
    %464 = vmatpush1.msra.mxu0 %v463
    %465 = vmatprep.subr.mxu0 0.0
    %466 = vmatpush1.msra.mxu0 0.0
    %467 = vmatprep.subr.mxu0 0.0
    %468 = vmatpush1.msra.mxu0 0.0
    %469 = vmatprep.subr.mxu0 0.0
    %470 = vmatpush1.msra.mxu0 0.0
    %471 = vmatprep.subr.mxu0 0.0
    %472 = vmatpush1.msra.mxu0 0.0
    %473 = vmatprep.subr.mxu0 0.0
    %474 = vmatpush1.msra.mxu0 0.0
    %475 = vmatprep.subr.mxu0 0.0
    %476 = vmatpush1.msra.mxu0 0.0
    %477 = vmatprep.subr.mxu0 0.0
    %478 = vmatpush1.msra.mxu0 0.0
    %479 = vmatprep.subr.mxu0 0.0
    %480 = vmatpush1.msra.mxu0 0.0
    %481 = vmatprep.subr.mxu0 0.0
    %482 = vmatpush1.msra.mxu0 0.0
    %483 = vmatprep.subr.mxu0 0.0
    %484 = vmatpush1.msra.mxu0 0.0
    %485 = vmatprep.subr.mxu0 0.0
    %486 = vmatpush1.msra.mxu0 0.0
    %487 = vmatprep.subr.mxu0 0.0
    %488 = vmatpush1.msra.mxu0 0.0
    %489 = vmatprep.subr.mxu0 0.0
    %490 = vmatpush1.msra.mxu0 0.0
    %491 = vmatprep.subr.mxu0 0.0
    %492 = vmatpush1.msra.mxu0 0.0
    %493 = vmatprep.subr.mxu0 0.0
    %494 = vmatpush1.msra.mxu0 0.0
    %495 = vmatprep.subr.mxu0 0.0
    %496 = vmatpush1.msra.mxu0 0.0
    %497 = vmatprep.subr.mxu0 0.0
    %498 = vmatpush1.msra.mxu0 0.0
    %499 = vmatprep.subr.mxu0 0.0
    %500 = vmatpush1.msra.mxu0 0.0
    %501 = vmatprep.subr.mxu0 0.0
    %502 = vmatpush1.msra.mxu0 0.0
    %503 = vmatprep.subr.mxu0 0.0
    %504 = vmatpush1.msra.mxu0 0.0
    %505 = vmatprep.subr.mxu0 0.0
    %506 = vmatpush1.msra.mxu0 0.0
    %507 = vmatprep.subr.mxu0 0.0
    %508 = vmatpush1.msra.mxu0 0.0
    %509 = vmatprep.subr.mxu0 0.0
    %510 = vmatpush1.msra.mxu0 0.0
    %511 = vmatprep.subr.mxu0 0.0
    %512 = vmatpush1.msra.mxu0 0.0
    %513 = vmatprep.subr.mxu0 0.0
    %514 = vmatpush1.msra.mxu0 0.0
    %515 = vmatprep.subr.mxu0 0.0
    %516 = vmatpush1.msra.mxu0 0.0
    %517 = vmatprep.subr.mxu0 0.0
    %518 = vmatpush1.msra.mxu0 0.0
    %519 = vmatprep.subr.mxu0 0.0
    %520 = vmatpush1.msra.mxu0 0.0
    %521 = vmatprep.subr.mxu0 0.0
    %522 = vmatpush1.msra.mxu0 0.0
    %523 = vmatprep.subr.mxu0 0.0
    %524 = vmatpush1.msra.mxu0 0.0
    %525 = vmatprep.subr.mxu0 0.0
    %526 = vmatpush1.msra.mxu0 0.0
    %527 = vmatprep.mubr.f32.mxu0 0.0
    %v528 = vand.u32 %v52, 4294901760
    %529 = vmatmul.mubr.f32.gmra.mrb[0].mxu0 %v528
    %v530 = vpop.f32.mrb[0].mxu0
    %v531 = vadd.f32 %v433, %v530
    %v532 = vpop.f32.mrb[0].mxu0
    %533 = vmatprep.mubr.f32.mxu0 0.0
    %v534 = vand.u32 %v55, 4294901760
    %535 = vmatmul.mubr.f32.gmra.mrb[0].mxu0 %v534
    %v536 = vpop.f32.mrb[0].mxu0
    %v537 = vadd.f32 %v441, %v536
    %v538 = vpop.f32.mrb[0].mxu0
    %539 = vmatprep.mubr.f32.mxu0 0.0
    %v540 = vand.u32 %v58, 4294901760
    %541 = vmatmul.mubr.f32.gmra.mrb[0].mxu0 %v540
    %v542 = vpop.f32.mrb[0].mxu0
    %v543 = vadd.f32 %v449, %v542
    %v544 = vpop.f32.mrb[0].mxu0
    %545 = vmatprep.mubr.f32.mxu0 0.0
    %v546 = vand.u32 %v61, 4294901760
    %547 = vmatmul.mubr.f32.gmra.mrb[0].mxu0 %v546
    %v548 = vpop.f32.mrb[0].mxu0
    %v549 = vadd.f32 %v457, %v548
    %v550 = vpop.f32.mrb[0].mxu0
    %551 = vdwg.mxu0
    %552 = vmatprep.subr.mxu0 0.0
    %v553 = vand.u32 %v65, 4294901760
    %554 = vmatpush1.msra.mxu0 %v553
    %555 = vmatprep.subr.mxu0 0.0
    %556 = vmatpush1.msra.mxu0 0.0
    %557 = vmatprep.subr.mxu0 0.0
    %558 = vmatpush1.msra.mxu0 0.0
    %559 = vmatprep.subr.mxu0 0.0
    %560 = vmatpush1.msra.mxu0 0.0
    %561 = vmatprep.subr.mxu0 0.0
    %562 = vmatpush1.msra.mxu0 0.0
    %563 = vmatprep.subr.mxu0 0.0
    %564 = vmatpush1.msra.mxu0 0.0
    %565 = vmatprep.subr.mxu0 0.0
    %566 = vmatpush1.msra.mxu0 0.0
    %567 = vmatprep.subr.mxu0 0.0
    %568 = vmatpush1.msra.mxu0 0.0
    %569 = vmatprep.subr.mxu0 0.0
    %570 = vmatpush1.msra.mxu0 0.0
    %571 = vmatprep.subr.mxu0 0.0
    %572 = vmatpush1.msra.mxu0 0.0
    %573 = vmatprep.subr.mxu0 0.0
    %574 = vmatpush1.msra.mxu0 0.0
    %575 = vmatprep.subr.mxu0 0.0
    %576 = vmatpush1.msra.mxu0 0.0
    %577 = vmatprep.subr.mxu0 0.0
    %578 = vmatpush1.msra.mxu0 0.0
    %579 = vmatprep.subr.mxu0 0.0
    %580 = vmatpush1.msra.mxu0 0.0
    %581 = vmatprep.subr.mxu0 0.0
    %582 = vmatpush1.msra.mxu0 0.0
    %583 = vmatprep.subr.mxu0 0.0
    %584 = vmatpush1.msra.mxu0 0.0
    %585 = vmatprep.subr.mxu0 0.0
    %586 = vmatpush1.msra.mxu0 0.0
    %587 = vmatprep.subr.mxu0 0.0
    %588 = vmatpush1.msra.mxu0 0.0
    %589 = vmatprep.subr.mxu0 0.0
    %590 = vmatpush1.msra.mxu0 0.0
    %591 = vmatprep.subr.mxu0 0.0
    %592 = vmatpush1.msra.mxu0 0.0
    %593 = vmatprep.subr.mxu0 0.0
    %594 = vmatpush1.msra.mxu0 0.0
    %595 = vmatprep.subr.mxu0 0.0
    %596 = vmatpush1.msra.mxu0 0.0
    %597 = vmatprep.subr.mxu0 0.0
    %598 = vmatpush1.msra.mxu0 0.0
    %599 = vmatprep.subr.mxu0 0.0
    %600 = vmatpush1.msra.mxu0 0.0
    %601 = vmatprep.subr.mxu0 0.0
    %602 = vmatpush1.msra.mxu0 0.0
    %603 = vmatprep.subr.mxu0 0.0
    %604 = vmatpush1.msra.mxu0 0.0
    %605 = vmatprep.subr.mxu0 0.0
    %606 = vmatpush1.msra.mxu0 0.0
    %607 = vmatprep.subr.mxu0 0.0
    %608 = vmatpush1.msra.mxu0 0.0
    %609 = vmatprep.subr.mxu0 0.0
    %610 = vmatpush1.msra.mxu0 0.0
    %611 = vmatprep.subr.mxu0 0.0
    %612 = vmatpush1.msra.mxu0 0.0
    %613 = vmatprep.subr.mxu0 0.0
    %614 = vmatpush1.msra.mxu0 0.0
    %615 = vmatprep.subr.mxu0 0.0
    %616 = vmatpush1.msra.mxu0 0.0
    %617 = vmatprep.mubr.f32.mxu0 0.0
    %v618 = vand.u32 %v52, 4294901760
    %619 = vmatmul.mubr.f32.gmra.mrb[0].mxu0 %v618
    %v620 = vpop.f32.mrb[0].mxu0
    %v621 = vadd.f32 %v531, %v620
    %v622 = vpop.f32.mrb[0].mxu0
    %623 = vmatprep.mubr.f32.mxu0 0.0
    %v624 = vand.u32 %v55, 4294901760
    %625 = vmatmul.mubr.f32.gmra.mrb[0].mxu0 %v624
    %v626 = vpop.f32.mrb[0].mxu0
    %v627 = vadd.f32 %v537, %v626
    %v628 = vpop.f32.mrb[0].mxu0
    %629 = vmatprep.mubr.f32.mxu0 0.0
    %v630 = vand.u32 %v58, 4294901760
    %631 = vmatmul.mubr.f32.gmra.mrb[0].mxu0 %v630
    %v632 = vpop.f32.mrb[0].mxu0
    %v633 = vadd.f32 %v543, %v632
    %v634 = vpop.f32.mrb[0].mxu0
    %635 = vmatprep.mubr.f32.mxu0 0.0
    %v636 = vand.u32 %v61, 4294901760
    %637 = vmatmul.mubr.f32.gmra.mrb[0].mxu0 %v636
    %v638 = vpop.f32.mrb[0].mxu0
    %v639 = vadd.f32 %v549, %v638
    %v640 = vpop.f32.mrb[0].mxu0
    %641 = vdwg.mxu0
    %v642 = vmax.f32 %v621, 0.0
    %v643 = vmax.f32 %v627, 0.0
    %v644 = vmax.f32 %v633, 0.0
    %v645 = vmax.f32 %v639, 0.0
    %v646 = vld [vmem:[%s3] sm:$0x3]
    %v647 = vld [vmem:[%s4] sm:$0x3]
    %649 = vset.pattern.permute.xlu0 0
    %650 = vperm.xlu0 %649, %v647
    %v651 = vpop.permute.xlu0 %650
    %vm653 = vcmask 261120
    %v655 = vsel %vm653, %v646, 0
    %657 = vmatprep.subr.mxu0 0.0
    %v658 = vand.u32 %v642, 4294901760
    %659 = vmatpush1.msra.mxu0 %v658
    %660 = vmatprep.subr.mxu0 0.0
    %v661 = vand.u32 %v643, 4294901760
    %662 = vmatpush1.msra.mxu0 %v661
    %663 = vmatprep.subr.mxu0 0.0
    %v664 = vand.u32 %v644, 4294901760
    %665 = vmatpush1.msra.mxu0 %v664
    %666 = vmatprep.subr.mxu0 0.0
    %v667 = vand.u32 %v645, 4294901760
    %668 = vmatpush1.msra.mxu0 %v667
    %669 = vmatprep.subr.mxu0 0.0
    %670 = vmatpush1.msra.mxu0 0.0
    %671 = vmatprep.subr.mxu0 0.0
    %672 = vmatpush1.msra.mxu0 0.0
    %673 = vmatprep.subr.mxu0 0.0
    %674 = vmatpush1.msra.mxu0 0.0
    %675 = vmatprep.subr.mxu0 0.0
    %676 = vmatpush1.msra.mxu0 0.0
    %677 = vmatprep.subr.mxu0 0.0
    %678 = vmatpush1.msra.mxu0 0.0
    %679 = vmatprep.subr.mxu0 0.0
    %680 = vmatpush1.msra.mxu0 0.0
    %681 = vmatprep.subr.mxu0 0.0
    %682 = vmatpush1.msra.mxu0 0.0
    %683 = vmatprep.subr.mxu0 0.0
    %684 = vmatpush1.msra.mxu0 0.0
    %685 = vmatprep.subr.mxu0 0.0
    %686 = vmatpush1.msra.mxu0 0.0
    %687 = vmatprep.subr.mxu0 0.0
    %688 = vmatpush1.msra.mxu0 0.0
    %689 = vmatprep.subr.mxu0 0.0
    %690 = vmatpush1.msra.mxu0 0.0
    %691 = vmatprep.subr.mxu0 0.0
    %692 = vmatpush1.msra.mxu0 0.0
    %693 = vmatprep.subr.mxu0 0.0
    %694 = vmatpush1.msra.mxu0 0.0
    %695 = vmatprep.subr.mxu0 0.0
    %696 = vmatpush1.msra.mxu0 0.0
    %697 = vmatprep.subr.mxu0 0.0
    %698 = vmatpush1.msra.mxu0 0.0
    %699 = vmatprep.subr.mxu0 0.0
    %700 = vmatpush1.msra.mxu0 0.0
    %701 = vmatprep.subr.mxu0 0.0
    %702 = vmatpush1.msra.mxu0 0.0
    %703 = vmatprep.subr.mxu0 0.0
    %704 = vmatpush1.msra.mxu0 0.0
    %705 = vmatprep.subr.mxu0 0.0
    %706 = vmatpush1.msra.mxu0 0.0
    %707 = vmatprep.subr.mxu0 0.0
    %708 = vmatpush1.msra.mxu0 0.0
    %709 = vmatprep.subr.mxu0 0.0
    %710 = vmatpush1.msra.mxu0 0.0
    %711 = vmatprep.subr.mxu0 0.0
    %712 = vmatpush1.msra.mxu0 0.0
    %713 = vmatprep.subr.mxu0 0.0
    %714 = vmatpush1.msra.mxu0 0.0
    %715 = vmatprep.subr.mxu0 0.0
    %716 = vmatpush1.msra.mxu0 0.0
    %717 = vmatprep.subr.mxu0 0.0
    %718 = vmatpush1.msra.mxu0 0.0
    %719 = vmatprep.subr.mxu0 0.0
    %720 = vmatpush1.msra.mxu0 0.0
    %721 = vmatprep.subr.mxu0 0.0
    %722 = vmatpush1.msra.mxu0 0.0
    %723 = vmatprep.subr.mxu0 0.0
    %724 = vmatpush1.msra.mxu0 0.0
    %725 = vmatprep.mubr.f32.mxu0 0.0
    %v726 = vand.u32 %v655, 4294901760
    %v727 = vsub.f32 %v655, %v726
    %v728 = vand.u32 %v727, 4294901760
    %v729 = vsub.f32 %v727, %v728
    %v730 = vand.u32 %v729, 4294901760
    %731 = vmatmul.mubr.f32.gmra.mrb[0].mxu0 %v730
    %v732 = vpop.f32.mrb[0].mxu0
    %v733 = vadd.f32 %v651, %v732
    %v734 = vpop.f32.mrb[0].mxu0
    %735 = vdwg.mxu0
    %736 = vmatprep.subr.mxu0 0.0
    %v737 = vand.u32 %v642, 4294901760
    %v738 = vsub.f32 %v642, %v737
    %v739 = vand.u32 %v738, 4294901760
    %v740 = vsub.f32 %v738, %v739
    %v741 = vand.u32 %v740, 4294901760
    %742 = vmatpush1.msra.mxu0 %v741
    %743 = vmatprep.subr.mxu0 0.0
    %v744 = vand.u32 %v643, 4294901760
    %v745 = vsub.f32 %v643, %v744
    %v746 = vand.u32 %v745, 4294901760
    %v747 = vsub.f32 %v745, %v746
    %v748 = vand.u32 %v747, 4294901760
    %749 = vmatpush1.msra.mxu0 %v748
    %750 = vmatprep.subr.mxu0 0.0
    %v751 = vand.u32 %v644, 4294901760
    %v752 = vsub.f32 %v644, %v751
    %v753 = vand.u32 %v752, 4294901760
    %v754 = vsub.f32 %v752, %v753
    %v755 = vand.u32 %v754, 4294901760
    %756 = vmatpush1.msra.mxu0 %v755
    %757 = vmatprep.subr.mxu0 0.0
    %v758 = vand.u32 %v645, 4294901760
    %v759 = vsub.f32 %v645, %v758
    %v760 = vand.u32 %v759, 4294901760
    %v761 = vsub.f32 %v759, %v760
    %v762 = vand.u32 %v761, 4294901760
    %763 = vmatpush1.msra.mxu0 %v762
    %764 = vmatprep.subr.mxu0 0.0
    %765 = vmatpush1.msra.mxu0 0.0
    %766 = vmatprep.subr.mxu0 0.0
    %767 = vmatpush1.msra.mxu0 0.0
    %768 = vmatprep.subr.mxu0 0.0
    %769 = vmatpush1.msra.mxu0 0.0
    %770 = vmatprep.subr.mxu0 0.0
    %771 = vmatpush1.msra.mxu0 0.0
    %772 = vmatprep.subr.mxu0 0.0
    %773 = vmatpush1.msra.mxu0 0.0
    %774 = vmatprep.subr.mxu0 0.0
    %775 = vmatpush1.msra.mxu0 0.0
    %776 = vmatprep.subr.mxu0 0.0
    %777 = vmatpush1.msra.mxu0 0.0
    %778 = vmatprep.subr.mxu0 0.0
    %779 = vmatpush1.msra.mxu0 0.0
    %780 = vmatprep.subr.mxu0 0.0
    %781 = vmatpush1.msra.mxu0 0.0
    %782 = vmatprep.subr.mxu0 0.0
    %783 = vmatpush1.msra.mxu0 0.0
    %784 = vmatprep.subr.mxu0 0.0
    %785 = vmatpush1.msra.mxu0 0.0
    %786 = vmatprep.subr.mxu0 0.0
    %787 = vmatpush1.msra.mxu0 0.0
    %788 = vmatprep.subr.mxu0 0.0
    %789 = vmatpush1.msra.mxu0 0.0
    %790 = vmatprep.subr.mxu0 0.0
    %791 = vmatpush1.msra.mxu0 0.0
    %792 = vmatprep.subr.mxu0 0.0
    %793 = vmatpush1.msra.mxu0 0.0
    %794 = vmatprep.subr.mxu0 0.0
    %795 = vmatpush1.msra.mxu0 0.0
    %796 = vmatprep.subr.mxu0 0.0
    %797 = vmatpush1.msra.mxu0 0.0
    %798 = vmatprep.subr.mxu0 0.0
    %799 = vmatpush1.msra.mxu0 0.0
    %800 = vmatprep.subr.mxu0 0.0
    %801 = vmatpush1.msra.mxu0 0.0
    %802 = vmatprep.subr.mxu0 0.0
    %803 = vmatpush1.msra.mxu0 0.0
    %804 = vmatprep.subr.mxu0 0.0
    %805 = vmatpush1.msra.mxu0 0.0
    %806 = vmatprep.subr.mxu0 0.0
    %807 = vmatpush1.msra.mxu0 0.0
    %808 = vmatprep.subr.mxu0 0.0
    %809 = vmatpush1.msra.mxu0 0.0
    %810 = vmatprep.subr.mxu0 0.0
    %811 = vmatpush1.msra.mxu0 0.0
    %812 = vmatprep.subr.mxu0 0.0
    %813 = vmatpush1.msra.mxu0 0.0
    %814 = vmatprep.subr.mxu0 0.0
    %815 = vmatpush1.msra.mxu0 0.0
    %816 = vmatprep.subr.mxu0 0.0
    %817 = vmatpush1.msra.mxu0 0.0
    %818 = vmatprep.subr.mxu0 0.0
    %819 = vmatpush1.msra.mxu0 0.0
    %820 = vmatprep.mubr.f32.mxu0 0.0
    %v821 = vand.u32 %v655, 4294901760
    %822 = vmatmul.mubr.f32.gmra.mrb[0].mxu0 %v821
    %v823 = vpop.f32.mrb[0].mxu0
    %v824 = vadd.f32 %v733, %v823
    %v825 = vpop.f32.mrb[0].mxu0
    %826 = vdwg.mxu0
    %827 = vmatprep.subr.mxu0 0.0
    %v828 = vand.u32 %v642, 4294901760
    %v829 = vsub.f32 %v642, %v828
    %830 = vmatpush1.msra.mxu0 %v829
    %831 = vmatprep.subr.mxu0 0.0
    %v832 = vand.u32 %v643, 4294901760
    %v833 = vsub.f32 %v643, %v832
    %834 = vmatpush1.msra.mxu0 %v833
    %835 = vmatprep.subr.mxu0 0.0
    %v836 = vand.u32 %v644, 4294901760
    %v837 = vsub.f32 %v644, %v836
    %838 = vmatpush1.msra.mxu0 %v837
    %839 = vmatprep.subr.mxu0 0.0
    %v840 = vand.u32 %v645, 4294901760
    %v841 = vsub.f32 %v645, %v840
    %842 = vmatpush1.msra.mxu0 %v841
    %843 = vmatprep.subr.mxu0 0.0
    %844 = vmatpush1.msra.mxu0 0.0
    %845 = vmatprep.subr.mxu0 0.0
    %846 = vmatpush1.msra.mxu0 0.0
    %847 = vmatprep.subr.mxu0 0.0
    %848 = vmatpush1.msra.mxu0 0.0
    %849 = vmatprep.subr.mxu0 0.0
    %850 = vmatpush1.msra.mxu0 0.0
    %851 = vmatprep.subr.mxu0 0.0
    %852 = vmatpush1.msra.mxu0 0.0
    %853 = vmatprep.subr.mxu0 0.0
    %854 = vmatpush1.msra.mxu0 0.0
    %855 = vmatprep.subr.mxu0 0.0
    %856 = vmatpush1.msra.mxu0 0.0
    %857 = vmatprep.subr.mxu0 0.0
    %858 = vmatpush1.msra.mxu0 0.0
    %859 = vmatprep.subr.mxu0 0.0
    %860 = vmatpush1.msra.mxu0 0.0
    %861 = vmatprep.subr.mxu0 0.0
    %862 = vmatpush1.msra.mxu0 0.0
    %863 = vmatprep.subr.mxu0 0.0
    %864 = vmatpush1.msra.mxu0 0.0
    %865 = vmatprep.subr.mxu0 0.0
    %866 = vmatpush1.msra.mxu0 0.0
    %867 = vmatprep.subr.mxu0 0.0
    %868 = vmatpush1.msra.mxu0 0.0
    %869 = vmatprep.subr.mxu0 0.0
    %870 = vmatpush1.msra.mxu0 0.0
    %871 = vmatprep.subr.mxu0 0.0
    %872 = vmatpush1.msra.mxu0 0.0
    %873 = vmatprep.subr.mxu0 0.0
    %874 = vmatpush1.msra.mxu0 0.0
    %875 = vmatprep.subr.mxu0 0.0
    %876 = vmatpush1.msra.mxu0 0.0
    %877 = vmatprep.subr.mxu0 0.0
    %878 = vmatpush1.msra.mxu0 0.0
    %879 = vmatprep.subr.mxu0 0.0
    %880 = vmatpush1.msra.mxu0 0.0
    %881 = vmatprep.subr.mxu0 0.0
    %882 = vmatpush1.msra.mxu0 0.0
    %883 = vmatprep.subr.mxu0 0.0
    %884 = vmatpush1.msra.mxu0 0.0
    %885 = vmatprep.subr.mxu0 0.0
    %886 = vmatpush1.msra.mxu0 0.0
    %887 = vmatprep.subr.mxu0 0.0
    %888 = vmatpush1.msra.mxu0 0.0
    %889 = vmatprep.subr.mxu0 0.0
    %890 = vmatpush1.msra.mxu0 0.0
    %891 = vmatprep.subr.mxu0 0.0
    %892 = vmatpush1.msra.mxu0 0.0
    %893 = vmatprep.subr.mxu0 0.0
    %894 = vmatpush1.msra.mxu0 0.0
    %895 = vmatprep.subr.mxu0 0.0
    %896 = vmatpush1.msra.mxu0 0.0
    %897 = vmatprep.subr.mxu0 0.0
    %898 = vmatpush1.msra.mxu0 0.0
    %899 = vmatprep.mubr.f32.mxu0 0.0
    %v900 = vand.u32 %v655, 4294901760
    %v901 = vsub.f32 %v655, %v900
    %902 = vmatmul.mubr.f32.gmra.mrb[0].mxu0 %v901
    %v903 = vpop.f32.mrb[0].mxu0
    %v904 = vadd.f32 %v824, %v903
    %v905 = vpop.f32.mrb[0].mxu0
    %906 = vdwg.mxu0
    %907 = vmatprep.subr.mxu0 0.0
    %v908 = vand.u32 %v642, 4294901760
    %909 = vmatpush1.msra.mxu0 %v908
    %910 = vmatprep.subr.mxu0 0.0
    %v911 = vand.u32 %v643, 4294901760
    %912 = vmatpush1.msra.mxu0 %v911
    %913 = vmatprep.subr.mxu0 0.0
    %v914 = vand.u32 %v644, 4294901760
    %915 = vmatpush1.msra.mxu0 %v914
    %916 = vmatprep.subr.mxu0 0.0
    %v917 = vand.u32 %v645, 4294901760
    %918 = vmatpush1.msra.mxu0 %v917
    %919 = vmatprep.subr.mxu0 0.0
    %920 = vmatpush1.msra.mxu0 0.0
    %921 = vmatprep.subr.mxu0 0.0
    %922 = vmatpush1.msra.mxu0 0.0
    %923 = vmatprep.subr.mxu0 0.0
    %924 = vmatpush1.msra.mxu0 0.0
    %925 = vmatprep.subr.mxu0 0.0
    %926 = vmatpush1.msra.mxu0 0.0
    %927 = vmatprep.subr.mxu0 0.0
    %928 = vmatpush1.msra.mxu0 0.0
    %929 = vmatprep.subr.mxu0 0.0
    %930 = vmatpush1.msra.mxu0 0.0
    %931 = vmatprep.subr.mxu0 0.0
    %932 = vmatpush1.msra.mxu0 0.0
    %933 = vmatprep.subr.mxu0 0.0
    %934 = vmatpush1.msra.mxu0 0.0
    %935 = vmatprep.subr.mxu0 0.0
    %936 = vmatpush1.msra.mxu0 0.0
    %937 = vmatprep.subr.mxu0 0.0
    %938 = vmatpush1.msra.mxu0 0.0
    %939 = vmatprep.subr.mxu0 0.0
    %940 = vmatpush1.msra.mxu0 0.0
    %941 = vmatprep.subr.mxu0 0.0
    %942 = vmatpush1.msra.mxu0 0.0
    %943 = vmatprep.subr.mxu0 0.0
    %944 = vmatpush1.msra.mxu0 0.0
    %945 = vmatprep.subr.mxu0 0.0
    %946 = vmatpush1.msra.mxu0 0.0
    %947 = vmatprep.subr.mxu0 0.0
    %948 = vmatpush1.msra.mxu0 0.0
    %949 = vmatprep.subr.mxu0 0.0
    %950 = vmatpush1.msra.mxu0 0.0
    %951 = vmatprep.subr.mxu0 0.0
    %952 = vmatpush1.msra.mxu0 0.0
    %953 = vmatprep.subr.mxu0 0.0
    %954 = vmatpush1.msra.mxu0 0.0
    %955 = vmatprep.subr.mxu0 0.0
    %956 = vmatpush1.msra.mxu0 0.0
    %957 = vmatprep.subr.mxu0 0.0
    %958 = vmatpush1.msra.mxu0 0.0
    %959 = vmatprep.subr.mxu0 0.0
    %960 = vmatpush1.msra.mxu0 0.0
    %961 = vmatprep.subr.mxu0 0.0
    %962 = vmatpush1.msra.mxu0 0.0
    %963 = vmatprep.subr.mxu0 0.0
    %964 = vmatpush1.msra.mxu0 0.0
    %965 = vmatprep.subr.mxu0 0.0
    %966 = vmatpush1.msra.mxu0 0.0
    %967 = vmatprep.subr.mxu0 0.0
    %968 = vmatpush1.msra.mxu0 0.0
    %969 = vmatprep.subr.mxu0 0.0
    %970 = vmatpush1.msra.mxu0 0.0
    %971 = vmatprep.subr.mxu0 0.0
    %972 = vmatpush1.msra.mxu0 0.0
    %973 = vmatprep.subr.mxu0 0.0
    %974 = vmatpush1.msra.mxu0 0.0
    %975 = vmatprep.mubr.f32.mxu0 0.0
    %v976 = vand.u32 %v655, 4294901760
    %v977 = vsub.f32 %v655, %v976
    %v978 = vand.u32 %v977, 4294901760
    %979 = vmatmul.mubr.f32.gmra.mrb[0].mxu0 %v978
    %v980 = vpop.f32.mrb[0].mxu0
    %v981 = vadd.f32 %v904, %v980
    %v982 = vpop.f32.mrb[0].mxu0
    %983 = vdwg.mxu0
    %984 = vmatprep.subr.mxu0 0.0
    %v985 = vand.u32 %v642, 4294901760
    %v986 = vsub.f32 %v642, %v985
    %v987 = vand.u32 %v986, 4294901760
    %988 = vmatpush1.msra.mxu0 %v987
    %989 = vmatprep.subr.mxu0 0.0
    %v990 = vand.u32 %v643, 4294901760
    %v991 = vsub.f32 %v643, %v990
    %v992 = vand.u32 %v991, 4294901760
    %993 = vmatpush1.msra.mxu0 %v992
    %994 = vmatprep.subr.mxu0 0.0
    %v995 = vand.u32 %v644, 4294901760
    %v996 = vsub.f32 %v644, %v995
    %v997 = vand.u32 %v996, 4294901760
    %998 = vmatpush1.msra.mxu0 %v997
    %999 = vmatprep.subr.mxu0 0.0
    %v1000 = vand.u32 %v645, 4294901760
    %v1001 = vsub.f32 %v645, %v1000
    %v1002 = vand.u32 %v1001, 4294901760
    %1003 = vmatpush1.msra.mxu0 %v1002
    %1004 = vmatprep.subr.mxu0 0.0
    %1005 = vmatpush1.msra.mxu0 0.0
    %1006 = vmatprep.subr.mxu0 0.0
    %1007 = vmatpush1.msra.mxu0 0.0
    %1008 = vmatprep.subr.mxu0 0.0
    %1009 = vmatpush1.msra.mxu0 0.0
    %1010 = vmatprep.subr.mxu0 0.0
    %1011 = vmatpush1.msra.mxu0 0.0
    %1012 = vmatprep.subr.mxu0 0.0
    %1013 = vmatpush1.msra.mxu0 0.0
    %1014 = vmatprep.subr.mxu0 0.0
    %1015 = vmatpush1.msra.mxu0 0.0
    %1016 = vmatprep.subr.mxu0 0.0
    %1017 = vmatpush1.msra.mxu0 0.0
    %1018 = vmatprep.subr.mxu0 0.0
    %1019 = vmatpush1.msra.mxu0 0.0
    %1020 = vmatprep.subr.mxu0 0.0
    %1021 = vmatpush1.msra.mxu0 0.0
    %1022 = vmatprep.subr.mxu0 0.0
    %1023 = vmatpush1.msra.mxu0 0.0
    %1024 = vmatprep.subr.mxu0 0.0
    %1025 = vmatpush1.msra.mxu0 0.0
    %1026 = vmatprep.subr.mxu0 0.0
    %1027 = vmatpush1.msra.mxu0 0.0
    %1028 = vmatprep.subr.mxu0 0.0
    %1029 = vmatpush1.msra.mxu0 0.0
    %1030 = vmatprep.subr.mxu0 0.0
    %1031 = vmatpush1.msra.mxu0 0.0
    %1032 = vmatprep.subr.mxu0 0.0
    %1033 = vmatpush1.msra.mxu0 0.0
    %1034 = vmatprep.subr.mxu0 0.0
    %1035 = vmatpush1.msra.mxu0 0.0
    %1036 = vmatprep.subr.mxu0 0.0
    %1037 = vmatpush1.msra.mxu0 0.0
    %1038 = vmatprep.subr.mxu0 0.0
    %1039 = vmatpush1.msra.mxu0 0.0
    %1040 = vmatprep.subr.mxu0 0.0
    %1041 = vmatpush1.msra.mxu0 0.0
    %1042 = vmatprep.subr.mxu0 0.0
    %1043 = vmatpush1.msra.mxu0 0.0
    %1044 = vmatprep.subr.mxu0 0.0
    %1045 = vmatpush1.msra.mxu0 0.0
    %1046 = vmatprep.subr.mxu0 0.0
    %1047 = vmatpush1.msra.mxu0 0.0
    %1048 = vmatprep.subr.mxu0 0.0
    %1049 = vmatpush1.msra.mxu0 0.0
    %1050 = vmatprep.subr.mxu0 0.0
    %1051 = vmatpush1.msra.mxu0 0.0
    %1052 = vmatprep.subr.mxu0 0.0
    %1053 = vmatpush1.msra.mxu0 0.0
    %1054 = vmatprep.subr.mxu0 0.0
    %1055 = vmatpush1.msra.mxu0 0.0
    %1056 = vmatprep.subr.mxu0 0.0
    %1057 = vmatpush1.msra.mxu0 0.0
    %1058 = vmatprep.subr.mxu0 0.0
    %1059 = vmatpush1.msra.mxu0 0.0
    %1060 = vmatprep.mubr.f32.mxu0 0.0
    %v1061 = vand.u32 %v655, 4294901760
    %1062 = vmatmul.mubr.f32.gmra.mrb[0].mxu0 %v1061
    %v1063 = vpop.f32.mrb[0].mxu0
    %v1064 = vadd.f32 %v981, %v1063
    %v1065 = vpop.f32.mrb[0].mxu0
    %1066 = vdwg.mxu0
    %1067 = vmatprep.subr.mxu0 0.0
    %v1068 = vand.u32 %v642, 4294901760
    %1069 = vmatpush1.msra.mxu0 %v1068
    %1070 = vmatprep.subr.mxu0 0.0
    %v1071 = vand.u32 %v643, 4294901760
    %1072 = vmatpush1.msra.mxu0 %v1071
    %1073 = vmatprep.subr.mxu0 0.0
    %v1074 = vand.u32 %v644, 4294901760
    %1075 = vmatpush1.msra.mxu0 %v1074
    %1076 = vmatprep.subr.mxu0 0.0
    %v1077 = vand.u32 %v645, 4294901760
    %1078 = vmatpush1.msra.mxu0 %v1077
    %1079 = vmatprep.subr.mxu0 0.0
    %1080 = vmatpush1.msra.mxu0 0.0
    %1081 = vmatprep.subr.mxu0 0.0
    %1082 = vmatpush1.msra.mxu0 0.0
    %1083 = vmatprep.subr.mxu0 0.0
    %1084 = vmatpush1.msra.mxu0 0.0
    %1085 = vmatprep.subr.mxu0 0.0
    %1086 = vmatpush1.msra.mxu0 0.0
    %1087 = vmatprep.subr.mxu0 0.0
    %1088 = vmatpush1.msra.mxu0 0.0
    %1089 = vmatprep.subr.mxu0 0.0
    %1090 = vmatpush1.msra.mxu0 0.0
    %1091 = vmatprep.subr.mxu0 0.0
    %1092 = vmatpush1.msra.mxu0 0.0
    %1093 = vmatprep.subr.mxu0 0.0
    %1094 = vmatpush1.msra.mxu0 0.0
    %1095 = vmatprep.subr.mxu0 0.0
    %1096 = vmatpush1.msra.mxu0 0.0
    %1097 = vmatprep.subr.mxu0 0.0
    %1098 = vmatpush1.msra.mxu0 0.0
    %1099 = vmatprep.subr.mxu0 0.0
    %1100 = vmatpush1.msra.mxu0 0.0
    %1101 = vmatprep.subr.mxu0 0.0
    %1102 = vmatpush1.msra.mxu0 0.0
    %1103 = vmatprep.subr.mxu0 0.0
    %1104 = vmatpush1.msra.mxu0 0.0
    %1105 = vmatprep.subr.mxu0 0.0
    %1106 = vmatpush1.msra.mxu0 0.0
    %1107 = vmatprep.subr.mxu0 0.0
    %1108 = vmatpush1.msra.mxu0 0.0
    %1109 = vmatprep.subr.mxu0 0.0
    %1110 = vmatpush1.msra.mxu0 0.0
    %1111 = vmatprep.subr.mxu0 0.0
    %1112 = vmatpush1.msra.mxu0 0.0
    %1113 = vmatprep.subr.mxu0 0.0
    %1114 = vmatpush1.msra.mxu0 0.0
    %1115 = vmatprep.subr.mxu0 0.0
    %1116 = vmatpush1.msra.mxu0 0.0
    %1117 = vmatprep.subr.mxu0 0.0
    %1118 = vmatpush1.msra.mxu0 0.0
    %1119 = vmatprep.subr.mxu0 0.0
    %1120 = vmatpush1.msra.mxu0 0.0
    %1121 = vmatprep.subr.mxu0 0.0
    %1122 = vmatpush1.msra.mxu0 0.0
    %1123 = vmatprep.subr.mxu0 0.0
    %1124 = vmatpush1.msra.mxu0 0.0
    %1125 = vmatprep.subr.mxu0 0.0
    %1126 = vmatpush1.msra.mxu0 0.0
    %1127 = vmatprep.subr.mxu0 0.0
    %1128 = vmatpush1.msra.mxu0 0.0
    %1129 = vmatprep.subr.mxu0 0.0
    %1130 = vmatpush1.msra.mxu0 0.0
    %1131 = vmatprep.subr.mxu0 0.0
    %1132 = vmatpush1.msra.mxu0 0.0
    %1133 = vmatprep.subr.mxu0 0.0
    %1134 = vmatpush1.msra.mxu0 0.0
    %1135 = vmatprep.mubr.f32.mxu0 0.0
    %v1136 = vand.u32 %v655, 4294901760
    %1137 = vmatmul.mubr.f32.gmra.mrb[0].mxu0 %v1136
    %v1138 = vpop.f32.mrb[0].mxu0
    %v1139 = vadd.f32 %v1064, %v1138
    %v1140 = vpop.f32.mrb[0].mxu0
    %1141 = vdwg.mxu0
    %vm1142 = vcmask 58368
    %1143 = vst.msk [vmem:[#allocation2] sm:$0x3] %vm1142, %v1139
    // Predicated region
    $region22: #{tpu_custom_call.1} parent=1 // pred_check
      _
    $region23: #{tpu_custom_call.1} parent=1 // pred_check_branch
      %1145 = sbr.rel (0) target = $region25
    $region24: #{tpu_custom_call.1} parent=1 // pred_region
      %s1147 = ssub.s32 32, 32
      %1148 = vsyncadd [#allocation3], %s1147
      %s1150 = sshll.u32 [#allocation2], 4
      %s1151 = int_to_ptr.vmem [resolvable:$true] %s1150
      %1153 = dma.vmem_to_hbm [thread:$0]  %s1151, 32, %s5, [#allocation3]
    $region25: #{tpu_custom_call.1} parent=1 // pred_fallthru
      _
    // Predicated region
    $region26: #{tpu_custom_call.1} parent=1 // pred_check
      _
    $region27: #{tpu_custom_call.1} parent=1 // pred_check_branch
      %1155 = sbr.rel (0) target = $region29
    $region28: #{tpu_custom_call.1} parent=1 // pred_region
      %1156 = dma.done [#allocation3], 32
    $region29: #{tpu_custom_call.1} parent=1 // pred_fallthru
      _
    %1157 = vsyncpa [#allocation3], 1

</llo_original>
